<compile_context>
chip_gen: v5e
topology: v5e:2x2
jax: 0.10.0
libtpu: 0.0.40
codegen_flags: <defaults>
</compile_context>

<pallas_src>
import numpy as np
import jax
import jax.numpy as jnp
from jax.experimental import pallas as pl
from jax.experimental.pallas import tpu as pltpu


# --------------------------------------------------------------------------- #
# helpers
# --------------------------------------------------------------------------- #
def _round_up(x, m):
    return ((x + m - 1) // m) * m


def _itemsize(dt):
    return jnp.dtype(dt).itemsize


def _pick_tile(dim, max_tile, align):
    """Tile size <= max_tile: full-extent if it fits, else an `align`-multiple
    chosen to minimize wasted work in the last (partial) block."""
    if dim <= max_tile:
        return dim                                  # full-dim block: always legal
    max_tile = max(align, (max_tile // align) * align)
    nblocks = -(-dim // max_tile)
    balanced = -(-dim // nblocks)
    return min(_round_up(balanced, align), max_tile)


# --------------------------------------------------------------------------- #
# kernels
# --------------------------------------------------------------------------- #
def _mm_kernel_f32(x_ref, w_ref, o_ref):
    """f32 output: accumulate directly into the K-resident output block."""
    @pl.when(pl.program_id(2) == 0)
    def _():
        o_ref[...] = jnp.zeros_like(o_ref)

    o_ref[...] += jnp.dot(x_ref[...], w_ref[...],
                          preferred_element_type=jnp.float32)


def _mm_bias_kernel_f32(x_ref, w_ref, b_ref, o_ref):
    """f32 output + bias folded into the k==0 init."""
    @pl.when(pl.program_id(2) == 0)
    def _():
        o_ref[...] = jnp.broadcast_to(b_ref[...].astype(jnp.float32), o_ref.shape)

    o_ref[...] += jnp.dot(x_ref[...], w_ref[...],
                          preferred_element_type=jnp.float32)


def _mm_kernel_acc(x_ref, w_ref, o_ref, acc_ref):
    """Sub-f32 output: f32 scratch accumulator, cast at the last K step."""
    k = pl.program_id(2)

    @pl.when(k == 0)
    def _():
        acc_ref[...] = jnp.zeros_like(acc_ref)

    acc_ref[...] += jnp.dot(x_ref[...], w_ref[...],
                            preferred_element_type=jnp.float32)

    @pl.when(k == pl.num_programs(2) - 1)
    def _():
        o_ref[...] = acc_ref[...].astype(o_ref.dtype)


def _mm_bias_kernel_acc(x_ref, w_ref, b_ref, o_ref, acc_ref):
    k = pl.program_id(2)

    @pl.when(k == 0)
    def _():
        acc_ref[...] = jnp.broadcast_to(b_ref[...].astype(jnp.float32),
                                        acc_ref.shape)

    acc_ref[...] += jnp.dot(x_ref[...], w_ref[...],
                            preferred_element_type=jnp.float32)

    @pl.when(k == pl.num_programs(2) - 1)
    def _():
        o_ref[...] = acc_ref[...].astype(o_ref.dtype)


# --------------------------------------------------------------------------- #
# pallas_call wrapper (2-D GEMM: x2d [M,K] @ w_t [K,N] (+ bias))
# --------------------------------------------------------------------------- #
def _linear_matmul(x2d, w_t, bias2d=None, *, out_dtype, tm=512, tn=512, tk=1024):
    m, k_in = x2d.shape
    assert w_t.shape[0] == k_in, (w_t.shape, k_in)
    n = w_t.shape[1]
    out_dtype = jnp.dtype(out_dtype)

    # Defensive: MXU tiles should share a dtype (pre-cast in LinearND to avoid
    # this per-call copy).
    if w_t.dtype != x2d.dtype:
        w_t = w_t.astype(x2d.dtype)

    # ---- tile selection -------------------------------------------------- #
    TM = _pick_tile(m, tm, 8)        # sublane-aligned rows
    TN = _pick_tile(n, tn, 128)      # lane-dense output columns

    # v7x has 2 TensorCores: make sure a "parallel" axis has >= 2 blocks when
    # the grid would otherwise be 1x1xK. (One extra ~0.35us step on v5e/v6e.)
    if pl.cdiv(m, TM) == 1 and pl.cdiv(n, TN) == 1 and n >= 256:
        TN = _round_up(-(-n // 2), 128)

    # K tile: full-K block when it fits (no accumulator traffic, no padding),
    # otherwise a 128-aligned tile; only K genuinely needs zero padding.
    if k_in <= tk:
        TK = k_in
    else:
        TK = _pick_tile(k_in, max(tk, 128), 128)
    k_pad = _round_up(k_in, TK)
    if k_pad != k_in:
        x2d = jnp.pad(x2d, ((0, 0), (0, k_pad - k_in)))
        w_t = jnp.pad(w_t, ((0, k_pad - k_in), (0, 0)))

    grid = (pl.cdiv(m, TM), pl.cdiv(n, TN), k_pad // TK)

    x_spec = pl.BlockSpec((TM, TK), lambda i, j, k: (i, k))
    w_spec = pl.BlockSpec((TK, TN), lambda i, j, k: (k, j))
    o_spec = pl.BlockSpec((TM, TN), lambda i, j, k: (i, j))

    direct = out_dtype == jnp.dtype(jnp.float32)
    scratch_shapes = [] if direct else [pltpu.VMEM((TM, TN), jnp.float32)]

    # ---- VMEM budget / compiler params ----------------------------------- #
    vmem_bytes = (2 * TM * TK * _itemsize(x2d.dtype)
                  + 2 * TK * TN * _itemsize(w_t.dtype)
                  + 2 * TM * TN * _itemsize(out_dtype))
    if not direct:
        vmem_bytes += TM * TN * 4
    if bias2d is not None:
        vmem_bytes += 2 * TN * _itemsize(bias2d.dtype)
    vlim = None
    if vmem_bytes > 12 * 1024 * 1024:
        # Raise scoped-VMEM cap (defaults 16 MiB v5e / 32 MiB v6e,v7x) with
        # headroom, staying well under the smallest physical VMEM (64 MiB v7x).
        vlim = min(int(vmem_bytes * 1.5) + (4 << 20), 48 << 20)

    compiler_params = pltpu.CompilerParams(
        dimension_semantics=("parallel", "parallel", "arbitrary"),
        vmem_limit_bytes=vlim)

    bias_bytes = 0 if bias2d is None else bias2d.size * _itemsize(bias2d.dtype)
    cost = pl.CostEstimate(
        flops=2 * m * k_in * n,
        transcendentals=0,
        bytes_accessed=(m * k_in * _itemsize(x2d.dtype)
                        + k_in * n * _itemsize(w_t.dtype)
                        + m * n * _itemsize(out_dtype)
                        + int(bias_bytes)))

    out_shape = jax.ShapeDtypeStruct((m, n), out_dtype)

    if bias2d is not None:
        kernel = _mm_bias_kernel_f32 if direct else _mm_bias_kernel_acc
        b_spec = pl.BlockSpec((1, TN), lambda i, j, k: (0, j))
        in_specs = [x_spec, w_spec, b_spec]
        args = (x2d, w_t, bias2d)
    else:
        kernel = _mm_kernel_f32 if direct else _mm_kernel_acc
        in_specs = [x_spec, w_spec]
        args = (x2d, w_t)

    return pl.pallas_call(
        kernel,
        out_shape=out_shape,
        grid_spec=pltpu.PrefetchScalarGridSpec(
            num_scalar_prefetch=0,
            grid=grid,
            in_specs=in_specs,
            out_specs=o_spec,
            scratch_shapes=scratch_shapes),
        compiler_params=compiler_params,
        cost_estimate=cost,
    )(*args)


# --------------------------------------------------------------------------- #
# LinearND forward (N-D handling, dropout parity)
# --------------------------------------------------------------------------- #
def _forward(xs, w_t, bias2d, *, dropout, training, mxu_dtype, tm, tn, tk):
    if dropout > 0.0 and training:
        # TODO(synk): training-mode dropout would use pltpu.prng_seed +
        # pltpu.prng_random_bits inside the kernel; not implemented here.
        raise NotImplementedError("training-mode dropout (p>0) not implemented")

    size = list(xs.shape)
    in_size = size[-1]
    out_size = w_t.shape[1]
    assert w_t.shape[0] == in_size, (w_t.shape, in_size)
    out_dtype = xs.dtype

    m = int(np.prod(size[:-1])) if len(size) > 1 else 1
    size[-1] = out_size
    if m == 0:
        return jnp.zeros(size, dtype=out_dtype)

    x2d = xs.reshape((m, in_size))
    if mxu_dtype is not None:
        x2d = x2d.astype(mxu_dtype)        # opt-in bf16 MXU inputs, f32 accum

    out = _linear_matmul(x2d, w_t, bias2d, out_dtype=out_dtype,
                         tm=tm, tn=tn, tk=tk)
    return out.reshape(size)


def linear_nd(xs, weight, bias=None, *, dropout=0.0, training=False,
              mxu_dtype=None, tm=512, tn=512, tk=1024):
    """Functional LinearND forward. `weight` is torch nn.Linear (out, in) layout.

    Note: transposes the weight per call — prefer the LinearND class below,
    which caches the pre-transposed (and optionally pre-cast) weight once.
    """
    w_t = jnp.asarray(weight).T            # (in, out)
    if mxu_dtype is not None:
        w_t = w_t.astype(mxu_dtype)
    b2d = None if bias is None else jnp.asarray(bias).reshape(1, -1)
    return _forward(xs, w_t, b2d, dropout=dropout, training=training,
                    mxu_dtype=mxu_dtype, tm=tm, tn=tn, tk=tk)


class LinearND:
    """Pallas TPU port of neural_sp LinearND (nn.Linear on last dim + dropout).

    The weight is transposed (and optionally cast for the MXU) once at
    construction, mirroring a cached module parameter.
    """

    def __init__(self, weight, bias=None, dropout=0.0, *, mxu_dtype=None,
                 tm=512, tn=512, tk=1024):
        w_t = jnp.asarray(weight).T                      # (in_size, out_size)
        if mxu_dtype is not None:
            w_t = w_t.astype(mxu_dtype)
        self.w_t = w_t
        self.b2d = None if bias is None else jnp.asarray(bias).reshape(1, -1)
        self.dropout = float(dropout)
        self.mxu_dtype = mxu_dtype
        self.tm, self.tn, self.tk = tm, tn, tk

    def __call__(self, xs, training=False):
        return _forward(xs, self.w_t, self.b2d, dropout=self.dropout,
                        training=training, mxu_dtype=self.mxu_dtype,
                        tm=self.tm, tn=self.tn, tk=self.tk)


# --------------------------------------------------------------------------- #
# tests
# --------------------------------------------------------------------------- #
if __name__ == "__main__":
    key = jax.random.PRNGKey(0)
    kx, kw, kb, kx2, kw2, kb2, kx4, kw4, kb4 = jax.random.split(key, 9)

    # ---- test 1: small N-D input, bias, single grid step (class wrapper) ----
    in_size, out_size = 32, 64
    x = jax.random.normal(kx, (2, 8, in_size), dtype=jnp.float32)
    bound = 1.0 / np.sqrt(in_size)
    weight = jax.random.uniform(kw, (out_size, in_size), dtype=jnp.float32,
                                minval=-bound, maxval=bound)
    bias = jax.random.uniform(kb, (out_size,), dtype=jnp.float32,
                              minval=-bound, maxval=bound)

    lin1 = LinearND(weight, bias)
    y1 = jax.block_until_ready(lin1(x))
    ref1 = (x.reshape(-1, in_size) @ weight.T + bias).reshape(2, 8, out_size)
    assert y1.shape == (2, 8, out_size), y1.shape
    np.testing.assert_allclose(np.asarray(y1), np.asarray(ref1),
                               rtol=1e-5, atol=1e-5)

    # ---- test 2: ragged dims + K tiling (tk=128 -> 2 K steps, K zero-pad),
    #              no bias (functional wrapper) ----
    in2, out2 = 160, 96
    x2 = jax.random.normal(kx2, (3, 5, in2), dtype=jnp.float32)
    bound2 = 1.0 / np.sqrt(in2)
    w2 = jax.random.uniform(kw2, (out2, in2), dtype=jnp.float32,
                            minval=-bound2, maxval=bound2)
    y2 = jax.block_until_ready(linear_nd(x2, w2, bias=None, tk=128))
    ref2 = (x2.reshape(-1, in2) @ w2.T).reshape(3, 5, out2)
    np.testing.assert_allclose(np.asarray(y2), np.asarray(ref2),
                               rtol=1e-4, atol=1e-4)

    # ---- test 3: bias + K tiling together ----
    b2 = jax.random.uniform(kb2, (out2,), dtype=jnp.float32,
                            minval=-bound2, maxval=bound2)
    y3 = jax.block_until_ready(linear_nd(x2, w2, b2, tk=128))
    ref3 = (x2.reshape(-1, in2) @ w2.T + b2).reshape(3, 5, out2)
    np.testing.assert_allclose(np.asarray(y3), np.asarray(ref3),
                               rtol=1e-4, atol=1e-4)

    # ---- test 4: partial (non-dividing) M and N blocks + K padding, bias ----
    in4, out4 = 200, 176
    x4 = jax.random.normal(kx4, (4, 50, in4), dtype=jnp.float32)
    bound4 = 1.0 / np.sqrt(in4)
    w4 = jax.random.uniform(kw4, (out4, in4), dtype=jnp.float32,
                            minval=-bound4, maxval=bound4)
    b4 = jax.random.uniform(kb4, (out4,), dtype=jnp.float32,
                            minval=-bound4, maxval=bound4)
    lin4 = LinearND(w4, b4, tm=32, tn=128, tk=128)
    y4 = jax.block_until_ready(lin4(x4))
    ref4 = (x4.reshape(-1, in4) @ w4.T + b4).reshape(4, 50, out4)
    assert y4.shape == (4, 50, out4), y4.shape
    np.testing.assert_allclose(np.asarray(y4), np.asarray(ref4),
                               rtol=2e-4, atol=2e-4)

    # ---- test 5: opt-in bf16 MXU inputs, f32 accumulation / output ----
    y5 = jax.block_until_ready(linear_nd(x2, w2, b2, mxu_dtype=jnp.bfloat16))
    ref5 = (jnp.dot(x2.reshape(-1, in2).astype(jnp.bfloat16),
                    w2.T.astype(jnp.bfloat16),
                    preferred_element_type=jnp.float32) + b2).reshape(3, 5, out2)
    assert y5.dtype == jnp.float32
    np.testing.assert_allclose(np.asarray(y5), np.asarray(ref5),
                               rtol=1e-2, atol=1e-2)

    # ---- test 6: bf16 activations/output (exercises the f32-scratch path) ----
    xb = x.astype(jnp.bfloat16)
    wb = weight.astype(jnp.bfloat16)
    lin6 = LinearND(wb, bias)
    y6 = jax.block_until_ready(lin6(xb))
    ref6 = (jnp.dot(xb.reshape(-1, in_size), wb.T,
                    preferred_element_type=jnp.float32) + bias
            ).astype(jnp.bfloat16).reshape(2, 8, out_size)
    assert y6.dtype == jnp.bfloat16
    np.testing.assert_allclose(np.asarray(y6, dtype=np.float32),
                               np.asarray(ref6, dtype=np.float32),
                               rtol=2e-2, atol=2e-2)

    print("KERNEL_OK")
</pallas_src>

<mosaic_0001>
module attributes {stable_mosaic.version = 11 : i64} {
  func.func @_mm_bias_kernel_f32(%arg0: i32, %arg1: i32, %arg2: i32, %arg3: memref<16x32xf32, #tpu.memory_space<vmem>>, %arg4: memref<32x64xf32, #tpu.memory_space<vmem>>, %arg5: memref<1x64xf32, #tpu.memory_space<vmem>>, %arg6: memref<16x64xf32, #tpu.memory_space<vmem>>) attributes {dimension_semantics = [#tpu.dimension_semantics<parallel>, #tpu.dimension_semantics<parallel>, #tpu.dimension_semantics<arbitrary>], iteration_bounds = array<i64: 1, 1, 1>, scalar_prefetch = 0 : i64, scratch_operands = 0 : i64, tpu.core_type = #tpu.core_type<tc>, window_params = [{transform_indices = @transform_0, window_bounds = array<i64: 16, 32>}, {transform_indices = @transform_1, window_bounds = array<i64: 32, 64>}, {transform_indices = @transform_2, window_bounds = array<i64: 1, 64>}, {transform_indices = @transform_3, window_bounds = array<i64: 16, 64>}]} {
    %c0_i32 = arith.constant 0 : i32
    %0 = arith.cmpi eq, %arg2, %c0_i32 : i32
    %1 = arith.extui %0 : i1 to i32
    %c0_i32_0 = arith.constant 0 : i32
    %2 = arith.cmpi ne, %1, %c0_i32_0 : i32
    scf.if %2 {
      %c0_8 = arith.constant 0 : index
      %c0_9 = arith.constant 0 : index
      %9 = vector.load %arg5[%c0_8, %c0_9] : memref<1x64xf32, #tpu.memory_space<vmem>>, vector<1x64xf32>
      %10 = vector.shape_cast %9 : vector<1x64xf32> to vector<1x64xf32>
      %11 = vector.broadcast %10 : vector<1x64xf32> to vector<16x64xf32>
      %c0_10 = arith.constant 0 : index
      %c0_11 = arith.constant 0 : index
      %12 = vector.load %arg6[%c0_10, %c0_11] : memref<16x64xf32, #tpu.memory_space<vmem>>, vector<16x64xf32>
      tpu.vector_store %arg6[%c0_10, %c0_11], %11 {strides = array<i32>} : memref<16x64xf32, #tpu.memory_space<vmem>>, vector<16x64xf32>,
    } else {
    }
    %c0 = arith.constant 0 : index
    %c0_1 = arith.constant 0 : index
    %3 = vector.load %arg6[%c0, %c0_1] : memref<16x64xf32, #tpu.memory_space<vmem>>, vector<16x64xf32>
    %c0_2 = arith.constant 0 : index
    %c0_3 = arith.constant 0 : index
    %4 = vector.load %arg3[%c0_2, %c0_3] : memref<16x32xf32, #tpu.memory_space<vmem>>, vector<16x32xf32>
    %c0_4 = arith.constant 0 : index
    %c0_5 = arith.constant 0 : index
    %5 = vector.load %arg4[%c0_4, %c0_5] : memref<32x64xf32, #tpu.memory_space<vmem>>, vector<32x64xf32>
    %cst = arith.constant dense<0.000000e+00> : vector<16x64xf32>
    %6 = tpu.matmul %4, %5, %cst {dimension_numbers = #tpu.dot_dimension_numbers<[1], [0], [0], [1], [0, 0, 1, 1], [], []>} : vector<16x32xf32>, vector<32x64xf32>, vector<16x64xf32> -> vector<16x64xf32>
    %7 = arith.addf %3, %6 : vector<16x64xf32>
    %c0_6 = arith.constant 0 : index
    %c0_7 = arith.constant 0 : index
    %8 = vector.load %arg6[%c0_6, %c0_7] : memref<16x64xf32, #tpu.memory_space<vmem>>, vector<16x64xf32>
    tpu.vector_store %arg6[%c0_6, %c0_7], %7 {strides = array<i32>} : memref<16x64xf32, #tpu.memory_space<vmem>>, vector<16x64xf32>,
    return
  }
  func.func @transform_0(%arg0: i32, %arg1: i32, %arg2: i32) -> (i32, i32) {
    %c0_i32 = arith.constant 0 : i32
    return %arg0, %arg2 : i32, i32
  }
  func.func @transform_1(%arg0: i32, %arg1: i32, %arg2: i32) -> (i32, i32) {
    %c0_i32 = arith.constant 0 : i32
    return %arg2, %arg1 : i32, i32
  }
  func.func @transform_2(%arg0: i32, %arg1: i32, %arg2: i32) -> (i32, i32) {
    %c0_i32 = arith.constant 0 : i32
    %c0_i32_0 = arith.constant 0 : i32
    return %c0_i32, %arg1 : i32, i32
  }
  func.func @transform_3(%arg0: i32, %arg1: i32, %arg2: i32) -> (i32, i32) {
    %c0_i32 = arith.constant 0 : i32
    return %arg0, %arg1 : i32, i32
  }
}

</mosaic_0001>

<llo_original>
// kernel: tpu_custom_call.1
$region0: #{tpu_custom_call.1}
  #allocation0 [shape = 'u32[]', space=smem, size = 0x4, offset = 0x4, fixed_abs, tag = 'smem constant byte address 0x4 - core index']
  #allocation1 [shape = 'u32[72,128]{1,0:T(1,128)}', space=vmem, size = 0x9000, scoped, tag = 'internal scratch']
  %s0 = inlined_call_operand.hbm [shape: f32[16,32], index: 0, kind: input, shape index: {}]
  %s1 = inlined_call_operand.hbm [shape: f32[32,64], index: 1, kind: input, shape index: {}]
  %s2 = inlined_call_operand.vmem [shape: f32[1,64], index: 2, kind: input, shape index: {}]
  %s3 = inlined_call_operand.hbm [shape: f32[16,64], index: 3, kind: output, shape index: {}]
  %s4 = sld [smem:[#allocation0]]
  $region34: #{tpu_custom_call.1} parent=0
    _
  %s6 = ssub.s32 1, %s4
  %s7 = scalar_select 0, %s6, %s4
  $region1: #{tpu_custom_call.1} parent=0
    #allocation2 [shape = 'u8[8192]{0}', space=vmem, size = 0x2000, scoped, tag = 'input window, operand 0, single buffered']
    #allocation3 [shape = 's32[1]{0}', space=sflag, size = 0x4, scoped, tag = 'scoped memory for tpu_custom_call.1']
    #allocation4 [shape = 's32[1]{0}', space=sflag, size = 0x4, scoped, tag = 'scoped memory for tpu_custom_call.1']
    #allocation5 [shape = 'u8[16384]{0}', space=vmem, size = 0x4000, scoped, tag = 'input window, operand 1, single buffered']
    #allocation6 [shape = 's32[1]{0}', space=sflag, size = 0x4, scoped, tag = 'scoped memory for tpu_custom_call.1']
    #allocation7 [shape = 'u8[8192]{0}', space=vmem, size = 0x2000, scoped, tag = 'output window, operand 0, single buffered']
    %8 = vsyncpa [#allocation3], 0
    %9 = vsyncpa [#allocation6], 0
    %10 = vsyncpa [#allocation4], 0
    // Predicated region
    $region2: #{tpu_custom_call.1} parent=1 // pred_check
      _
    $region3: #{tpu_custom_call.1} parent=1 // pred_check_branch
      %12 = sbr.rel (0) target = $region5
    $region4: #{tpu_custom_call.1} parent=1 // pred_region
      %14 = vsyncadd [#allocation3], 0
      %s15 = sshll.u32 %s0, 4
      %s16 = int_to_ptr.hbm [resolvable:$true] %s15
      %s17 = sshll.u32 [#allocation2], 4
      %s18 = int_to_ptr.vmem [resolvable:$true] %s17
      %23 = dma.hbm_to_vmem [thread:$0]  %s16, 256, %s18, [#allocation3], 128, 128, 8
    $region5: #{tpu_custom_call.1} parent=1 // pred_fallthru
      _
    // Predicated region
    $region6: #{tpu_custom_call.1} parent=1 // pred_check
      _
    $region7: #{tpu_custom_call.1} parent=1 // pred_check_branch
      %25 = sbr.rel (0) target = $region9
    $region8: #{tpu_custom_call.1} parent=1 // pred_region
      %27 = vsyncadd [#allocation6], 0
      %s28 = sshll.u32 %s1, 4
      %s29 = int_to_ptr.hbm [resolvable:$true] %s28
      %s30 = sshll.u32 [#allocation5], 4
      %s31 = int_to_ptr.vmem [resolvable:$true] %s30
      %36 = dma.hbm_to_vmem [thread:$0]  %s29, 512, %s31, [#allocation6], 128, 128, 8
    $region9: #{tpu_custom_call.1} parent=1 // pred_fallthru
      _
    // Predicated region
    $region10: #{tpu_custom_call.1} parent=1 // pred_check
      _
    $region11: #{tpu_custom_call.1} parent=1 // pred_check_branch
      %38 = sbr.rel (0) target = $region13
    $region12: #{tpu_custom_call.1} parent=1 // pred_region
      _
    $region13: #{tpu_custom_call.1} parent=1 // pred_fallthru
      _
    // Predicated region
    $region14: #{tpu_custom_call.1} parent=1 // pred_check
      _
    $region15: #{tpu_custom_call.1} parent=1 // pred_check_branch
      %40 = sbr.rel (0) target = $region17
    $region16: #{tpu_custom_call.1} parent=1 // pred_region
      %42 = dma.done [#allocation3], 256
    $region17: #{tpu_custom_call.1} parent=1 // pred_fallthru
      _
    // Predicated region
    $region18: #{tpu_custom_call.1} parent=1 // pred_check
      _
    $region19: #{tpu_custom_call.1} parent=1 // pred_check_branch
      %44 = sbr.rel (0) target = $region21
    $region20: #{tpu_custom_call.1} parent=1 // pred_region
      %46 = dma.done [#allocation6], 512
    $region21: #{tpu_custom_call.1} parent=1 // pred_fallthru
      _
    %p47 = scmp.eq.s32.totalorder 0, 0
    // Predicated region
    $region22: #{tpu_custom_call.1} parent=1 // pred_check
      %p48 = pneg %p47
    $region23: #{tpu_custom_call.1} parent=1 // pred_check_branch
      %50 = sbr.rel (%p48) target = $region25
    $region24: #{tpu_custom_call.1} parent=1 // pred_region
      %v51 = vld [vmem:[%s2] sm:$0x1]
      %v53 = vperm.slane %v51, 0
      %vm55 = vcmask 523264
      %56 = vst.msk [vmem:[#allocation7] sm:$0xff] %vm55, %v53
      %57 = vst.msk [vmem:[#allocation7 + $0x8] sm:$0xff] %vm55, %v53
    $region25: #{tpu_custom_call.1} parent=1 // pred_fallthru
      _
    %v58 = vld [vmem:[#allocation7] sm:$0xff]
    %v59 = vld [vmem:[#allocation7 + $0x8] sm:$0xff]
    %v60 = vld [vmem:[#allocation2] sm:$0xff]
    %v61 = vld [vmem:[#allocation2 + $0x8] sm:$0xff]
    %v62 = vld [vmem:[#allocation5] sm:$0xff]
    %v63 = vld [vmem:[#allocation5 + $0x8] sm:$0xff]
    %v64 = vld [vmem:[#allocation5 + $0x10] sm:$0xff]
    %v65 = vld [vmem:[#allocation5 + $0x18] sm:$0xff]
    %vm66 = vcmask 261120
    %v68 = vsel %vm66, %v60, 0
    %v71 = vsel %vm66, %v61, 0
    %73 = vmatpush.msra.mxu0 0.0
    %74 = vmatpush.msra.mxu0 0.0
    %75 = vmatpush.msra.mxu0 0.0
    %76 = vmatpush.msra.mxu0 0.0
    %77 = vmatpush.msra.mxu0 0.0
    %78 = vmatpush.msra.mxu0 0.0
    %79 = vmatpush.msra.mxu0 0.0
    %80 = vmatpush.msra.mxu0 0.0
    %81 = vmatpush.msra.mxu0 0.0
    %82 = vmatpush.msra.mxu0 0.0
    %83 = vmatpush.msra.mxu0 0.0
    %84 = vmatpush.msra.mxu0 0.0
    %85 = vmatpush.msra.mxu0 %v65
    %86 = vmatpush.msra.mxu0 %v64
    %87 = vmatpush.msra.mxu0 %v63
    %88 = vmatpush.msra.mxu0 %v62
    %89 = vmatmul.f32.gmra.mxu0 %v68
    %v90 = vpop.f32.mrf.mxu0
    %v91 = vadd.f32 0.0, %v90
    %92 = vmatmul.f32.gmra.mxu0 %v71
    %v93 = vpop.f32.mrf.mxu0
    %v94 = vadd.f32 0.0, %v93
    %95 = vdwg.mxu0
    %v96 = vadd.f32 %v58, %v91
    %v97 = vadd.f32 %v59, %v94
    %vm98 = vcmask 523264
    %99 = vst.msk [vmem:[#allocation7] sm:$0xff] %vm98, %v96
    %100 = vst.msk [vmem:[#allocation7 + $0x8] sm:$0xff] %vm98, %v97
    // Predicated region
    $region26: #{tpu_custom_call.1} parent=1 // pred_check
      _
    $region27: #{tpu_custom_call.1} parent=1 // pred_check_branch
      %102 = sbr.rel (0) target = $region29
    $region28: #{tpu_custom_call.1} parent=1 // pred_region
      %104 = vsyncadd [#allocation4], 0
      %s105 = sshll.u32 [#allocation7], 4
      %s106 = int_to_ptr.vmem [resolvable:$true] %s105
      %s107 = sshll.u32 %s3, 4
      %s108 = int_to_ptr.hbm [resolvable:$true] %s107
      %113 = dma.vmem_to_hbm [thread:$0]  %s106, 256, %s108, [#allocation4], 128, 128, 8
    $region29: #{tpu_custom_call.1} parent=1 // pred_fallthru
      _
    // Predicated region
    $region30: #{tpu_custom_call.1} parent=1 // pred_check
      _
    $region31: #{tpu_custom_call.1} parent=1 // pred_check_branch
      %115 = sbr.rel (0) target = $region33
    $region32: #{tpu_custom_call.1} parent=1 // pred_region
      %117 = dma.done [#allocation4], 256
    $region33: #{tpu_custom_call.1} parent=1 // pred_fallthru
      _
    %118 = vsyncpa [#allocation3], 1
    %119 = vsyncpa [#allocation6], 1
    %120 = vsyncpa [#allocation4], 1

</llo_original>
